<compile_context>
chip_gen: v7x
topology: tpu7x:2x2x1
jax: 0.10.0
libtpu: 0.0.40
codegen_flags: <defaults>
</compile_context>

<pallas_src>
import functools
import math

import jax
import jax.numpy as jnp
from jax import lax
from jax.experimental import pallas as pl
from jax.experimental.pallas import tpu as pltpu


def _round_up(x, m):
    return ((x + m - 1) // m) * m


def _tpu_vmem_capacity_bytes():
    try:
        return int(pltpu.get_tpu_info().vmem_capacity_bytes)
    except Exception:
        return 64 << 20   # conservative default (v7x per-core VMEM)


# ---------------------------------------------------------------------------
# Kernel 1: fused Q/K/V projection (one pass over the rows, weights resident).
# ---------------------------------------------------------------------------
def _qkv_proj_kernel(x_ref, wq_ref, wk_ref, wv_ref, bq_ref, bk_ref, bv_ref,
                     q_ref, k_ref, v_ref, *, scale, mxu_dtype):
    x = x_ref[...]                                             # (T, Ep) bf16
    q = jnp.dot(x, wq_ref[...], preferred_element_type=jnp.float32) + bq_ref[...]
    q_ref[...] = (q * scale).astype(mxu_dtype)                 # fold 1/sqrt(d_k) into Q
    k = jnp.dot(x, wk_ref[...], preferred_element_type=jnp.float32) + bk_ref[...]
    k_ref[...] = k.astype(mxu_dtype)
    v = jnp.dot(x, wv_ref[...], preferred_element_type=jnp.float32) + bv_ref[...]
    v_ref[...] = v.astype(mxu_dtype)


def _qkv_projection(xp2d, wqp, wkp, wvp, bq2, bk2, bv2, *,
                    row_tile, scale, mxu_dtype, vmem_limit):
    rows, ep = xp2d.shape
    hp = wqp.shape[-1]
    x_spec = pl.BlockSpec((row_tile, ep), lambda i: (i, 0))
    # Grid-invariant weights / biases: whole-array VMEM residents (single copy,
    # no per-step pipeline double-buffer).
    w_spec = pl.BlockSpec(memory_space=pltpu.MemorySpace.VMEM)
    o_spec = pl.BlockSpec((row_tile, hp), lambda i: (i, 0))
    out_sds = jax.ShapeDtypeStruct((rows, hp), mxu_dtype)

    kernel = functools.partial(_qkv_proj_kernel, scale=scale, mxu_dtype=mxu_dtype)
    return pl.pallas_call(
        kernel,
        out_shape=(out_sds, out_sds, out_sds),
        grid_spec=pltpu.PrefetchScalarGridSpec(
            num_scalar_prefetch=0,
            grid=(rows // row_tile,),
            in_specs=[x_spec, w_spec, w_spec, w_spec, w_spec, w_spec, w_spec],
            out_specs=[o_spec, o_spec, o_spec]),
        compiler_params=pltpu.CompilerParams(
            dimension_semantics=("parallel",),
            vmem_limit_bytes=vmem_limit),
    )(xp2d, wqp, wkp, wvp, bq2, bk2, bv2)


# ---------------------------------------------------------------------------
# Kernel 2: flash attention over precomputed (scaled) Q, K, V tiles.
# ---------------------------------------------------------------------------
def _flash_attn_kernel(q_ref, k_ref, v_ref, o_ref, m_scr, l_scr, acc_scr,
                       *, seq_len, kv_tile, mxu_dtype, mask_keys):
    ki = pl.program_id(2)

    @pl.when(ki == 0)
    def _init():
        m_scr[...] = jnp.full(m_scr.shape, -jnp.inf, dtype=jnp.float32)
        l_scr[...] = jnp.zeros(l_scr.shape, jnp.float32)
        acc_scr[...] = jnp.zeros(acc_scr.shape, jnp.float32)

    # Scores: contract the shared head dim of Q and K directly (no k.T / XLU
    # transpose); Q already carries the 1/sqrt(d_k) scale.
    s = lax.dot_general(q_ref[...], k_ref[...],
                        dimension_numbers=(((1,), (1,)), ((), ())),
                        preferred_element_type=jnp.float32)    # (TQ, TK)

    if mask_keys:
        # Only the last kv tile can hold padded keys (Sp - S < T, so a tile can
        # never be fully padded and -1e30 is safe vs. -inf).  (1, TK) iota +
        # compare, broadcast select over query rows.
        key_idx = lax.broadcasted_iota(jnp.int32, (1, kv_tile), 1)
        s = jnp.where(key_idx < seq_len - ki * kv_tile, s, -1e30)

    # Online softmax update (all statistics in f32).
    m_prev = m_scr[...]
    m_new = jnp.maximum(m_prev, jnp.max(s, axis=-1, keepdims=True))
    alpha = jnp.exp(m_prev - m_new)
    p = jnp.exp(s - m_new)
    l_scr[...] = alpha * l_scr[...] + jnp.sum(p, axis=-1, keepdims=True)
    acc_scr[...] = alpha * acc_scr[...] + jnp.dot(
        p.astype(mxu_dtype), v_ref[...], preferred_element_type=jnp.float32)
    m_scr[...] = m_new

    @pl.when(ki == pl.num_programs(2) - 1)
    def _finalize():
        inv_l = pl.reciprocal(l_scr[...], approx=True)
        o_ref[...] = (acc_scr[...] * inv_l).astype(o_ref.dtype)


def _flash_attention(qp, kp, vp, *, seq_tile, seq_len, out_dtype, mxu_dtype,
                     vmem_limit):
    b, sp, hp = qp.shape
    t = seq_tile
    q_spec = pl.BlockSpec((pl.Squeezed(), t, hp), lambda bi, qi, ki: (bi, qi, 0))
    kv_spec = pl.BlockSpec((pl.Squeezed(), t, hp), lambda bi, qi, ki: (bi, ki, 0))
    o_spec = pl.BlockSpec((pl.Squeezed(), t, hp), lambda bi, qi, ki: (bi, qi, 0))

    kernel = functools.partial(
        _flash_attn_kernel, seq_len=seq_len, kv_tile=t, mxu_dtype=mxu_dtype,
        mask_keys=(sp != seq_len))

    return pl.pallas_call(
        kernel,
        out_shape=jax.ShapeDtypeStruct((b, sp, hp), out_dtype),
        grid_spec=pltpu.PrefetchScalarGridSpec(
            num_scalar_prefetch=0,
            grid=(b, sp // t, sp // t),
            in_specs=[q_spec, kv_spec, kv_spec],
            out_specs=o_spec,
            scratch_shapes=[
                pltpu.VMEM((t, 1), jnp.float32),    # running max m
                pltpu.VMEM((t, 1), jnp.float32),    # running denom l
                pltpu.VMEM((t, hp), jnp.float32),   # output accumulator
            ]),
        compiler_params=pltpu.CompilerParams(
            dimension_semantics=("parallel", "parallel", "arbitrary"),
            vmem_limit_bytes=vmem_limit),
    )(qp, kp, vp)


# ---------------------------------------------------------------------------
# Kernel 3: fused single-block kernel for degenerate shapes (no seq tiling,
# no separate projection pass, f32 math).
# ---------------------------------------------------------------------------
def _fused_head_kernel(x_ref, wq_ref, wk_ref, wv_ref, bq_ref, bk_ref, bv_ref,
                       o_ref, *, scale, seq_len, mask_keys):
    x = x_ref[...]                                             # (Ss, Ep) f32
    q = (jnp.dot(x, wq_ref[...], preferred_element_type=jnp.float32)
         + bq_ref[...]) * scale
    k = jnp.dot(x, wk_ref[...], preferred_element_type=jnp.float32) + bk_ref[...]
    v = jnp.dot(x, wv_ref[...], preferred_element_type=jnp.float32) + bv_ref[...]
    s = lax.dot_general(q, k, dimension_numbers=(((1,), (1,)), ((), ())),
                        preferred_element_type=jnp.float32)    # (Ss, Ss)
    if mask_keys:
        key_idx = lax.broadcasted_iota(jnp.int32, (1, s.shape[-1]), 1)
        s = jnp.where(key_idx < seq_len, s, -1e30)
    s = s - jnp.max(s, axis=-1, keepdims=True)
    p = jnp.exp(s)
    p = p / jnp.sum(p, axis=-1, keepdims=True)
    o_ref[...] = jnp.dot(p, v, preferred_element_type=jnp.float32).astype(o_ref.dtype)


def _fused_single_block(hidden_state, wq, wk, wv, bq, bk, bv, *, scale, ep, hp):
    b, s, e = hidden_state.shape
    h = wq.shape[-1]
    ss = _round_up(s, 8)
    f32 = jnp.float32

    xp = jnp.pad(hidden_state, ((0, 0), (0, ss - s), (0, ep - e))).astype(f32)
    wqp = jnp.pad(wq, ((0, ep - e), (0, hp - h))).astype(f32)
    wkp = jnp.pad(wk, ((0, ep - e), (0, hp - h))).astype(f32)
    wvp = jnp.pad(wv, ((0, ep - e), (0, hp - h))).astype(f32)
    bq2 = jnp.pad(bq, (0, hp - h)).astype(f32).reshape(1, hp)
    bk2 = jnp.pad(bk, (0, hp - h)).astype(f32).reshape(1, hp)
    bv2 = jnp.pad(bv, (0, hp - h)).astype(f32).reshape(1, hp)

    kernel = functools.partial(_fused_head_kernel, scale=scale, seq_len=s,
                               mask_keys=(ss != s))
    out = pl.pallas_call(
        kernel,
        out_shape=jax.ShapeDtypeStruct((b, ss, hp), hidden_state.dtype),
        grid_spec=pltpu.PrefetchScalarGridSpec(
            num_scalar_prefetch=0,
            grid=(b,),
            in_specs=[pl.BlockSpec((pl.Squeezed(), ss, ep), lambda bi: (bi, 0, 0))]
                     + [pl.BlockSpec(memory_space=pltpu.MemorySpace.VMEM)] * 6,
            out_specs=pl.BlockSpec((pl.Squeezed(), ss, hp), lambda bi: (bi, 0, 0))),
        compiler_params=pltpu.CompilerParams(dimension_semantics=("parallel",)),
    )(xp, wqp, wkp, wvp, bq2, bk2, bv2)
    return out[:, :s, :h]


def _single_block_ok(seq_len, ep, hp):
    ss = _round_up(seq_len, 8)
    f32_bytes = 4 * (ss * ep + 3 * ep * hp + 3 * hp + 3 * ss * hp + ss * ss + ss * hp)
    return ss <= 512 and f32_bytes <= (6 << 20)


# ---------------------------------------------------------------------------
# Public wrapper.
# ---------------------------------------------------------------------------
def attention_head(hidden_state, wq, wk, wv, bq, bk, bv, *,
                   mxu_dtype=jnp.bfloat16, seq_tile=None, use_flash=None):
    """hidden_state: (B, S, E); weights (E, H); biases (H,). Returns (B, S, H)."""
    B, S, E = hidden_state.shape
    H = wq.shape[-1]
    out_dtype = hidden_state.dtype
    scale = 1.0 / math.sqrt(H)              # torch uses K.size(-1) == head_dim

    Ep = _round_up(E, 128)
    Hp = _round_up(H, 128)

    if use_flash is None:
        # Degenerate shapes: a single fused per-batch block beats the padded,
        # pipelined flash path (per-step overhead dominates there).
        use_flash = not _single_block_ok(S, Ep, Hp)

    if not use_flash:
        return _fused_single_block(hidden_state, wq, wk, wv, bq, bk, bv,
                                   scale=scale, ep=Ep, hp=Hp)

    # ------------------------- flash path -------------------------
    vmem_cap = _tpu_vmem_capacity_bytes()
    big_vmem = vmem_cap >= (100 << 20)       # v5e / v6e (128 MiB); v7x has 64 MiB
    budget = (100 << 20) if big_vmem else (48 << 20)

    if seq_tile is None:
        seq_tile = 512 if big_vmem else 256  # bigger tiles on the 128 MiB parts
    # Tiles as multiples of 16 rows so bf16 sublane pairs stay fully packed.
    T = min(_round_up(seq_tile, 16), _round_up(S, 16))

    mb = jnp.dtype(mxu_dtype).itemsize
    ob = jnp.dtype(out_dtype).itemsize

    def est_vmem(t):
        proj = (2 * t * Ep * mb              # x row-tile (double-buffered)
                + 3 * Ep * Hp * mb           # weights (single copy, VMEM resident)
                + 3 * Hp * 4                 # biases
                + 2 * 3 * t * Hp * mb)       # q/k/v output tiles (double-buffered)
        flash = (2 * 3 * t * Hp * mb         # q/k/v tiles (double-buffered)
                 + 2 * t * Hp * ob           # output tile
                 + t * Hp * 4 + 2 * t * 4)   # acc + m + l scratch
        return max(proj, flash)

    # Shrink the tile instead of relying on the cap when the footprint is large.
    while T > 64 and 2 * est_vmem(T) > budget:
        T = _round_up(T // 2, 16)
    # v7x has 2 TensorCores: keep at least 2 parallel (batch x q-tile) points.
    if not big_vmem:
        while T > 64 and B * (_round_up(S, T) // T) < 2:
            T = _round_up(T // 2, 16)
    Sp = _round_up(S, T)
    vmem_limit = int(min(max(2 * est_vmem(T), 32 << 20), budget))

    # Wrapper-side layout plumbing: lane-dense padding + MXU dtype.
    xp = jnp.pad(hidden_state, ((0, 0), (0, Sp - S), (0, Ep - E))).astype(mxu_dtype)
    xp2d = xp.reshape(B * Sp, Ep)
    wqp = jnp.pad(wq, ((0, Ep - E), (0, Hp - H))).astype(mxu_dtype)
    wkp = jnp.pad(wk, ((0, Ep - E), (0, Hp - H))).astype(mxu_dtype)
    wvp = jnp.pad(wv, ((0, Ep - E), (0, Hp - H))).astype(mxu_dtype)
    bq2 = jnp.pad(bq, (0, Hp - H)).astype(jnp.float32).reshape(1, Hp)
    bk2 = jnp.pad(bk, (0, Hp - H)).astype(jnp.float32).reshape(1, Hp)
    bv2 = jnp.pad(bv, (0, Hp - H)).astype(jnp.float32).reshape(1, Hp)

    # 1) One-pass Q/K/V projection (bias folded, Q pre-scaled, bf16 outputs).
    q2d, k2d, v2d = _qkv_projection(
        xp2d, wqp, wkp, wvp, bq2, bk2, bv2,
        row_tile=T, scale=scale, mxu_dtype=mxu_dtype, vmem_limit=vmem_limit)
    qp = q2d.reshape(B, Sp, Hp)
    kp = k2d.reshape(B, Sp, Hp)
    vp = v2d.reshape(B, Sp, Hp)

    # 2) Flash attention over the projected tiles (online softmax, bounded VMEM).
    out = _flash_attention(qp, kp, vp, seq_tile=T, seq_len=S,
                           out_dtype=out_dtype, mxu_dtype=mxu_dtype,
                           vmem_limit=vmem_limit)
    return out[:, :S, :H]


# ---------------------------------------------------------------------------
# Reference + self-test.
# ---------------------------------------------------------------------------
def _reference(hidden_state, wq, wk, wv, bq, bk, bv):
    q = hidden_state @ wq + bq
    k = hidden_state @ wk + bk
    v = hidden_state @ wv + bv
    s = jnp.einsum("bqd,bkd->bqk", q, k) / math.sqrt(wq.shape[-1])
    p = jax.nn.softmax(s, axis=-1)
    return jnp.einsum("bqk,bkd->bqd", p, v)


def _make_inputs(key, B, S, E, H):
    kx, kwq, kwk, kwv, kbq, kbk, kbv = jax.random.split(key, 7)
    # Mimic nn.Linear's U(-1/sqrt(E), 1/sqrt(E)) init.
    bound = 1.0 / math.sqrt(E)
    wq = jax.random.uniform(kwq, (E, H), jnp.float32, -bound, bound)
    wk = jax.random.uniform(kwk, (E, H), jnp.float32, -bound, bound)
    wv = jax.random.uniform(kwv, (E, H), jnp.float32, -bound, bound)
    bq = jax.random.uniform(kbq, (H,), jnp.float32, -bound, bound)
    bk = jax.random.uniform(kbk, (H,), jnp.float32, -bound, bound)
    bv = jax.random.uniform(kbv, (H,), jnp.float32, -bound, bound)
    x = jax.random.normal(kx, (B, S, E), jnp.float32)
    return x, wq, wk, wv, bq, bk, bv


if __name__ == "__main__":
    key = jax.random.PRNGKey(0)
    k1, k2 = jax.random.split(key)

    # 1) Degenerate module shape -> fused single-block kernel (no seq tiling).
    B, S, E, H = 2, 8, 32, 16
    x, wq, wk, wv, bq, bk, bv = _make_inputs(k1, B, S, E, H)
    out = jax.block_until_ready(attention_head(x, wq, wk, wv, bq, bk, bv))
    ref = _reference(x, wq, wk, wv, bq, bk, bv)
    assert out.shape == (B, S, H)
    assert jnp.allclose(out, ref, atol=2e-2, rtol=2e-2)

    # 2) Multi-tile flash path (projection kernel + online-softmax kernel),
    #    exercising seq padding + key masking across several kv tiles.
    B2, S2, E2, H2 = 2, 200, 256, 128
    x2, wq2, wk2, wv2, bq2, bk2, bv2 = _make_inputs(k2, B2, S2, E2, H2)
    out2 = jax.block_until_ready(
        attention_head(x2, wq2, wk2, wv2, bq2, bk2, bv2,
                       seq_tile=128, use_flash=True))
    ref2 = _reference(x2, wq2, wk2, wv2, bq2, bk2, bv2)
    assert out2.shape == (B2, S2, H2)
    # bf16 MXU operands (f32 accumulation) -> small drift vs the pure-f32 ref.
    assert jnp.allclose(out2, ref2, atol=2e-2, rtol=2e-2)

    print("KERNEL_OK")
</pallas_src>

<mosaic_0001>
module attributes {stable_mosaic.version = 11 : i64} {
  func.func @_fused_head_kernel(%arg0: i32, %arg1: memref<1x8x128xf32, #tpu.memory_space<vmem>>, %arg2: memref<128x128xf32, #tpu.memory_space<vmem>>, %arg3: memref<128x128xf32, #tpu.memory_space<vmem>>, %arg4: memref<128x128xf32, #tpu.memory_space<vmem>>, %arg5: memref<1x128xf32, #tpu.memory_space<vmem>>, %arg6: memref<1x128xf32, #tpu.memory_space<vmem>>, %arg7: memref<1x128xf32, #tpu.memory_space<vmem>>, %arg8: memref<1x8x128xf32, #tpu.memory_space<vmem>>) attributes {dimension_semantics = [#tpu.dimension_semantics<parallel>], iteration_bounds = array<i64: 2>, scalar_prefetch = 0 : i64, scratch_operands = 0 : i64, tpu.core_type = #tpu.core_type<tc>, window_params = [{transform_indices = @transform_0, window_bounds = array<i64: 1, 8, 128>}, {pipeline_mode = #tpu.pipeline_mode<synchronous>, transform_indices = @transform_1, window_bounds = array<i64: 128, 128>}, {pipeline_mode = #tpu.pipeline_mode<synchronous>, transform_indices = @transform_2, window_bounds = array<i64: 128, 128>}, {pipeline_mode = #tpu.pipeline_mode<synchronous>, transform_indices = @transform_3, window_bounds = array<i64: 128, 128>}, {pipeline_mode = #tpu.pipeline_mode<synchronous>, transform_indices = @transform_4, window_bounds = array<i64: 1, 128>}, {pipeline_mode = #tpu.pipeline_mode<synchronous>, transform_indices = @transform_5, window_bounds = array<i64: 1, 128>}, {pipeline_mode = #tpu.pipeline_mode<synchronous>, transform_indices = @transform_6, window_bounds = array<i64: 1, 128>}, {transform_indices = @transform_7, window_bounds = array<i64: 1, 8, 128>}]} {
    %c0 = arith.constant 0 : index
    %c0_0 = arith.constant 0 : index
    %c0_1 = arith.constant 0 : index
    %0 = vector.load %arg1[%c0, %c0_0, %c0_1] : memref<1x8x128xf32, #tpu.memory_space<vmem>>, vector<1x8x128xf32>
    %1 = vector.shape_cast %0 : vector<1x8x128xf32> to vector<8x128xf32>
    %c0_2 = arith.constant 0 : index
    %c0_3 = arith.constant 0 : index
    %2 = vector.load %arg2[%c0_2, %c0_3] : memref<128x128xf32, #tpu.memory_space<vmem>>, vector<128x128xf32>
    %cst = arith.constant dense<0.000000e+00> : vector<8x128xf32>
    %3 = tpu.matmul %1, %2, %cst {dimension_numbers = #tpu.dot_dimension_numbers<[1], [0], [0], [1], [0, 0, 1, 1], [], []>} : vector<8x128xf32>, vector<128x128xf32>, vector<8x128xf32> -> vector<8x128xf32>
    %c0_4 = arith.constant 0 : index
    %c0_5 = arith.constant 0 : index
    %4 = vector.load %arg5[%c0_4, %c0_5] : memref<1x128xf32, #tpu.memory_space<vmem>>, vector<1x128xf32>
    %5 = vector.broadcast %4 : vector<1x128xf32> to vector<8x128xf32>
    %6 = arith.addf %3, %5 : vector<8x128xf32>
    %cst_6 = arith.constant 2.500000e-01 : f32
    %7 = vector.broadcast %cst_6 : f32 to vector<8x128xf32>
    %8 = arith.mulf %6, %7 : vector<8x128xf32>
    %c0_7 = arith.constant 0 : index
    %c0_8 = arith.constant 0 : index
    %9 = vector.load %arg3[%c0_7, %c0_8] : memref<128x128xf32, #tpu.memory_space<vmem>>, vector<128x128xf32>
    %cst_9 = arith.constant dense<0.000000e+00> : vector<8x128xf32>
    %10 = tpu.matmul %1, %9, %cst_9 {dimension_numbers = #tpu.dot_dimension_numbers<[1], [0], [0], [1], [0, 0, 1, 1], [], []>} : vector<8x128xf32>, vector<128x128xf32>, vector<8x128xf32> -> vector<8x128xf32>
    %c0_10 = arith.constant 0 : index
    %c0_11 = arith.constant 0 : index
    %11 = vector.load %arg6[%c0_10, %c0_11] : memref<1x128xf32, #tpu.memory_space<vmem>>, vector<1x128xf32>
    %12 = vector.broadcast %11 : vector<1x128xf32> to vector<8x128xf32>
    %13 = arith.addf %10, %12 : vector<8x128xf32>
    %c0_12 = arith.constant 0 : index
    %c0_13 = arith.constant 0 : index
    %14 = vector.load %arg4[%c0_12, %c0_13] : memref<128x128xf32, #tpu.memory_space<vmem>>, vector<128x128xf32>
    %cst_14 = arith.constant dense<0.000000e+00> : vector<8x128xf32>
    %15 = tpu.matmul %1, %14, %cst_14 {dimension_numbers = #tpu.dot_dimension_numbers<[1], [0], [0], [1], [0, 0, 1, 1], [], []>} : vector<8x128xf32>, vector<128x128xf32>, vector<8x128xf32> -> vector<8x128xf32>
    %c0_15 = arith.constant 0 : index
    %c0_16 = arith.constant 0 : index
    %16 = vector.load %arg7[%c0_15, %c0_16] : memref<1x128xf32, #tpu.memory_space<vmem>>, vector<1x128xf32>
    %17 = vector.broadcast %16 : vector<1x128xf32> to vector<8x128xf32>
    %18 = arith.addf %15, %17 : vector<8x128xf32>
    %cst_17 = arith.constant dense<0.000000e+00> : vector<8x8xf32>
    %19 = tpu.matmul %8, %13, %cst_17 {dimension_numbers = #tpu.dot_dimension_numbers<[1], [1], [0], [0], [0, 0, 1, 0], [], []>} : vector<8x128xf32>, vector<8x128xf32>, vector<8x8xf32> -> vector<8x8xf32>
    %cst_18 = arith.constant dense<0xFF800000> : vector<8xf32>
    %20 = vector.multi_reduction <maximumf>, %19, %cst_18 [1] : vector<8x8xf32> to vector<8xf32>
    %21 = vector.shape_cast %20 : vector<8xf32> to vector<8x1xf32>
    %22 = vector.broadcast %21 : vector<8x1xf32> to vector<8x8xf32>
    %23 = arith.subf %19, %22 : vector<8x8xf32>
    %24 = math.exp %23 : vector<8x8xf32>
    %cst_19 = arith.constant dense<0.000000e+00> : vector<8xf32>
    %25 = vector.multi_reduction <add>, %24, %cst_19 [1] : vector<8x8xf32> to vector<8xf32>
    %26 = vector.shape_cast %25 : vector<8xf32> to vector<8x1xf32>
    %27 = vector.broadcast %26 : vector<8x1xf32> to vector<8x8xf32>
    %28 = arith.divf %24, %27 : vector<8x8xf32>
    %cst_20 = arith.constant dense<0.000000e+00> : vector<8x128xf32>
    %29 = tpu.matmul %28, %18, %cst_20 {dimension_numbers = #tpu.dot_dimension_numbers<[1], [0], [0], [1], [0, 0, 1, 1], [], []>} : vector<8x8xf32>, vector<8x128xf32>, vector<8x128xf32> -> vector<8x128xf32>
    %c0_21 = arith.constant 0 : index
    %c0_22 = arith.constant 0 : index
    %c0_23 = arith.constant 0 : index
    %30 = vector.load %arg8[%c0_21, %c0_22, %c0_23] : memref<1x8x128xf32, #tpu.memory_space<vmem>>, vector<1x8x128xf32>
    %31 = vector.shape_cast %30 : vector<1x8x128xf32> to vector<8x128xf32>
    %32 = vector.shape_cast %29 : vector<8x128xf32> to vector<1x8x128xf32>
    tpu.vector_store %arg8[%c0_21, %c0_22, %c0_23], %32 {strides = array<i32>} : memref<1x8x128xf32, #tpu.memory_space<vmem>>, vector<1x8x128xf32>,
    return
  }
  func.func @transform_0(%arg0: i32) -> (i32, i32, i32) {
    %c0_i32 = arith.constant 0 : i32
    %c0_i32_0 = arith.constant 0 : i32
    %c0_i32_1 = arith.constant 0 : i32
    return %arg0, %c0_i32, %c0_i32_0 : i32, i32, i32
  }
  func.func @transform_1(%arg0: i32) -> (i32, i32) {
    %c0_i32 = arith.constant 0 : i32
    %c0_i32_0 = arith.constant 0 : i32
    %c0_i32_1 = arith.constant 0 : i32
    return %c0_i32, %c0_i32_0 : i32, i32
  }
  func.func @transform_2(%arg0: i32) -> (i32, i32) {
    %c0_i32 = arith.constant 0 : i32
    %c0_i32_0 = arith.constant 0 : i32
    %c0_i32_1 = arith.constant 0 : i32
    return %c0_i32, %c0_i32_0 : i32, i32
  }
  func.func @transform_3(%arg0: i32) -> (i32, i32) {
    %c0_i32 = arith.constant 0 : i32
    %c0_i32_0 = arith.constant 0 : i32
    %c0_i32_1 = arith.constant 0 : i32
    return %c0_i32, %c0_i32_0 : i32, i32
  }
  func.func @transform_4(%arg0: i32) -> (i32, i32) {
    %c0_i32 = arith.constant 0 : i32
    %c0_i32_0 = arith.constant 0 : i32
    %c0_i32_1 = arith.constant 0 : i32
    return %c0_i32, %c0_i32_0 : i32, i32
  }
  func.func @transform_5(%arg0: i32) -> (i32, i32) {
    %c0_i32 = arith.constant 0 : i32
    %c0_i32_0 = arith.constant 0 : i32
    %c0_i32_1 = arith.constant 0 : i32
    return %c0_i32, %c0_i32_0 : i32, i32
  }
  func.func @transform_6(%arg0: i32) -> (i32, i32) {
    %c0_i32 = arith.constant 0 : i32
    %c0_i32_0 = arith.constant 0 : i32
    %c0_i32_1 = arith.constant 0 : i32
    return %c0_i32, %c0_i32_0 : i32, i32
  }
  func.func @transform_7(%arg0: i32) -> (i32, i32, i32) {
    %c0_i32 = arith.constant 0 : i32
    %c0_i32_0 = arith.constant 0 : i32
    %c0_i32_1 = arith.constant 0 : i32
    return %arg0, %c0_i32, %c0_i32_0 : i32, i32, i32
  }
}

</mosaic_0001>

<llo_original>
// kernel: tpu_custom_call.1
$region0: #{tpu_custom_call.1}
  #allocation0 [shape = 'u32[]', space=smem, size = 0x4, offset = 0x4, fixed_abs, tag = 'smem constant byte address 0x4 - core index']
  #allocation1 [shape = 'u32[144,128]{1,0:T(1,128)}', space=vmem, size = 0x12000, scoped, tag = 'internal scratch']
  %s0 = inlined_call_operand.hbm [shape: f32[2,8,128], index: 0, kind: input, shape index: {}]
  %s1 = inlined_call_operand.hbm [shape: f32[128,128], index: 1, kind: input, shape index: {}]
  %s2 = inlined_call_operand.hbm [shape: f32[128,128], index: 2, kind: input, shape index: {}]
  %s3 = inlined_call_operand.hbm [shape: f32[128,128], index: 3, kind: input, shape index: {}]
  %s4 = inlined_call_operand.vmem [shape: f32[1,128], index: 4, kind: input, shape index: {}]
  %s5 = inlined_call_operand.vmem [shape: f32[1,128], index: 5, kind: input, shape index: {}]
  %s6 = inlined_call_operand.vmem [shape: f32[1,128], index: 6, kind: input, shape index: {}]
  %s7 = inlined_call_operand.hbm [shape: f32[2,8,128], index: 7, kind: output, shape index: {}]
  %s8 = sld [smem:[#allocation0]]
  $region77: #{tpu_custom_call.1} parent=0
    _
  %s10 = ssub.s32 1, %s8
  %s11 = scalar_select 0, %s10, %s8
  $region1: #{tpu_custom_call.1} parent=0
    #allocation2 [shape = 'u8[8192]{0}', space=vmem, size = 0x2000, scoped, tag = 'input window, operand 0']
    #allocation3 [shape = 's32[2]{0}', space=sflag, size = 0x8, scoped, tag = 'scoped memory for tpu_custom_call.1']
    #allocation4 [shape = 's32[2]{0}', space=sflag, size = 0x8, scoped, tag = 'scoped memory for tpu_custom_call.1']
    #allocation5 [shape = 'u8[65536]{0}', space=vmem, size = 0x10000, scoped, tag = 'input window, operand 1, single buffered']
    #allocation6 [shape = 's32[1]{0}', space=sflag, size = 0x4, scoped, tag = 'scoped memory for tpu_custom_call.1']
    #allocation7 [shape = 'u8[65536]{0}', space=vmem, size = 0x10000, scoped, tag = 'input window, operand 2, single buffered']
    #allocation8 [shape = 'u8[65536]{0}', space=vmem, size = 0x10000, scoped, tag = 'input window, operand 3, single buffered']
    #allocation9 [shape = 's32[1]{0}', space=sflag, size = 0x4, scoped, tag = 'scoped memory for tpu_custom_call.1']
    #allocation10 [shape = 'u8[8192]{0}', space=vmem, size = 0x2000, scoped, tag = 'output window, operand 0']
    %12 = vsyncpa [#allocation3], 0
    %s13 = scalar_lea.sflag [#allocation3], 1
    %14 = vsyncpa %s13, 0
    %15 = vsyncpa [#allocation6], 0
    %16 = vsyncpa [#allocation9], 0
    %17 = vsyncpa [#allocation4], 0
    %s18 = scalar_lea.sflag [#allocation4], 1
    %19 = vsyncpa %s18, 0
    loop: start=0, step=1, limit=4
    $region2: #{tpu_custom_call.1} parent=1 // loop_pre_header
      _
    $region3: #{tpu_custom_call.1} parent=1 // loop_header
      %s21 = sphi 0, %s25
      %p22 = scmp.ge.s32.totalorder %s21, 4
      %s31 = sphi 0, %s33
      %s34 = sphi 0, %s31
      %s35 = sphi 0, %s34
      %s51 = sphi 0, %s35
      %s55 = sphi 0, %s55
      %s57 = sphi 0, %s55
      %s58 = sphi 0, %s57
      %s72 = sphi 0, %s58
      %s76 = sphi 0, %s76
      %s78 = sphi 0, %s76
      %s79 = sphi 0, %s78
      %s93 = sphi 0, %s79
      %s97 = sphi 0, %s97
      %s99 = sphi 0, %s97
      %s100 = sphi 0, %s99
      %s114 = sphi 0, %s100
      %s118 = sphi 0, %s118
      %s120 = sphi 0, %s118
      %s121 = sphi 0, %s120
      %s135 = sphi 0, %s121
      %s139 = sphi 0, %s139
      %s141 = sphi 0, %s139
      %s142 = sphi 0, %s141
      %s156 = sphi 0, %s142
      %s160 = sphi 0, %s160
      %s162 = sphi 0, %s160
      %s163 = sphi 0, %s162
      %s177 = sphi 0, %s163
      %s183 = sphi 0, %s185
      %s186 = sphi 0, %s183
      %s187 = sphi 0, %s186
      %s203 = sphi 0, %s187
    $region4: #{tpu_custom_call.1} parent=1 // loop_header_branch
      %24 = sbr.rel (%p22) target = $region8
    $region5: #{tpu_custom_call.1} parent=1 // loop_body
      %s26 = ssub.s32 %s21, 1
      %s27 = ssub.s32 %s21, 2
      %s28 = sadd.s32 %s21, 1
      %s29 = ssub.s32 %s21, %s28
      %p30 = scmp.eq.s32.totalorder %s29, 0
      %s32 = sadd.s32 %s31, 1
      %s33 = scalar_select %p30, %s31, %s32
      %p36 = pneg %p30
      %p37 = scmp.eq.s32.totalorder %s21, 1
      %p38 = por %p36, %p37
      %p39 = scmp.ne.s32.totalorder %s31, %s34
      %p40 = scmp.eq.s32.totalorder %s21, 0
      %p41 = por %p39, %p40
      %p42 = scmp.ne.s32.totalorder %s31, %s34
      %p43 = scmp.eq.s32.totalorder %s26, 1
      %p44 = por %p42, %p43
      %p45 = scmp.ne.s32.totalorder %s34, %s35
      %p46 = scmp.eq.s32.totalorder %s26, 0
      %p47 = por %p45, %p46
      %p48 = scmp.ne.s32.totalorder %s34, %s35
      %p49 = scmp.eq.s32.totalorder %s27, 1
      %p50 = por %p48, %p49
      %p52 = scmp.ne.s32.totalorder %s35, %s51
      %p53 = scmp.eq.s32.totalorder %s27, 0
      %p54 = por %p52, %p53
      %s56 = sadd.s32 %s55, 1
      %p59 = scmp.eq.s32.totalorder %s21, 1
      %p60 = scmp.ne.s32.totalorder %s55, %s57
      %p61 = scmp.eq.s32.totalorder %s21, 0
      %p62 = por %p60, %p61
      %p63 = scmp.ne.s32.totalorder %s55, %s57
      %p64 = scmp.eq.s32.totalorder %s26, 1
      %p65 = por %p63, %p64
      %p66 = scmp.ne.s32.totalorder %s57, %s58
      %p67 = scmp.eq.s32.totalorder %s26, 0
      %p68 = por %p66, %p67
      %p69 = scmp.ne.s32.totalorder %s57, %s58
      %p70 = scmp.eq.s32.totalorder %s27, 1
      %p71 = por %p69, %p70
      %p73 = scmp.ne.s32.totalorder %s58, %s72
      %p74 = scmp.eq.s32.totalorder %s27, 0
      %p75 = por %p73, %p74
      %s77 = sadd.s32 %s76, 1
      %p80 = scmp.eq.s32.totalorder %s21, 1
      %p81 = scmp.ne.s32.totalorder %s76, %s78
      %p82 = scmp.eq.s32.totalorder %s21, 0
      %p83 = por %p81, %p82
      %p84 = scmp.ne.s32.totalorder %s76, %s78
      %p85 = scmp.eq.s32.totalorder %s26, 1
      %p86 = por %p84, %p85
      %p87 = scmp.ne.s32.totalorder %s78, %s79
      %p88 = scmp.eq.s32.totalorder %s26, 0
      %p89 = por %p87, %p88
      %p90 = scmp.ne.s32.totalorder %s78, %s79
      %p91 = scmp.eq.s32.totalorder %s27, 1
      %p92 = por %p90, %p91
      %p94 = scmp.ne.s32.totalorder %s79, %s93
      %p95 = scmp.eq.s32.totalorder %s27, 0
      %p96 = por %p94, %p95
      %s98 = sadd.s32 %s97, 1
      %p101 = scmp.eq.s32.totalorder %s21, 1
      %p102 = scmp.ne.s32.totalorder %s97, %s99
      %p103 = scmp.eq.s32.totalorder %s21, 0
      %p104 = por %p102, %p103
      %p105 = scmp.ne.s32.totalorder %s97, %s99
      %p106 = scmp.eq.s32.totalorder %s26, 1
      %p107 = por %p105, %p106
      %p108 = scmp.ne.s32.totalorder %s99, %s100
      %p109 = scmp.eq.s32.totalorder %s26, 0
      %p110 = por %p108, %p109
      %p111 = scmp.ne.s32.totalorder %s99, %s100
      %p112 = scmp.eq.s32.totalorder %s27, 1
      %p113 = por %p111, %p112
      %p115 = scmp.ne.s32.totalorder %s100, %s114
      %p116 = scmp.eq.s32.totalorder %s27, 0
      %p117 = por %p115, %p116
      %s119 = sadd.s32 %s118, 1
      %p122 = scmp.eq.s32.totalorder %s21, 1
      %p123 = scmp.ne.s32.totalorder %s118, %s120
      %p124 = scmp.eq.s32.totalorder %s21, 0
      %p125 = por %p123, %p124
      %p126 = scmp.ne.s32.totalorder %s118, %s120
      %p127 = scmp.eq.s32.totalorder %s26, 1
      %p128 = por %p126, %p127
      %p129 = scmp.ne.s32.totalorder %s120, %s121
      %p130 = scmp.eq.s32.totalorder %s26, 0
      %p131 = por %p129, %p130
      %p132 = scmp.ne.s32.totalorder %s120, %s121
      %p133 = scmp.eq.s32.totalorder %s27, 1
      %p134 = por %p132, %p133
      %p136 = scmp.ne.s32.totalorder %s121, %s135
      %p137 = scmp.eq.s32.totalorder %s27, 0
      %p138 = por %p136, %p137
      %s140 = sadd.s32 %s139, 1
      %p143 = scmp.eq.s32.totalorder %s21, 1
      %p144 = scmp.ne.s32.totalorder %s139, %s141
      %p145 = scmp.eq.s32.totalorder %s21, 0
      %p146 = por %p144, %p145
      %p147 = scmp.ne.s32.totalorder %s139, %s141
      %p148 = scmp.eq.s32.totalorder %s26, 1
      %p149 = por %p147, %p148
      %p150 = scmp.ne.s32.totalorder %s141, %s142
      %p151 = scmp.eq.s32.totalorder %s26, 0
      %p152 = por %p150, %p151
      %p153 = scmp.ne.s32.totalorder %s141, %s142
      %p154 = scmp.eq.s32.totalorder %s27, 1
      %p155 = por %p153, %p154
      %p157 = scmp.ne.s32.totalorder %s142, %s156
      %p158 = scmp.eq.s32.totalorder %s27, 0
      %p159 = por %p157, %p158
      %s161 = sadd.s32 %s160, 1
      %p164 = scmp.eq.s32.totalorder %s21, 1
      %p165 = scmp.ne.s32.totalorder %s160, %s162
      %p166 = scmp.eq.s32.totalorder %s21, 0
      %p167 = por %p165, %p166
      %p168 = scmp.ne.s32.totalorder %s160, %s162
      %p169 = scmp.eq.s32.totalorder %s26, 1
      %p170 = por %p168, %p169
      %p171 = scmp.ne.s32.totalorder %s162, %s163
      %p172 = scmp.eq.s32.totalorder %s26, 0
      %p173 = por %p171, %p172
      %p174 = scmp.ne.s32.totalorder %s162, %s163
      %p175 = scmp.eq.s32.totalorder %s27, 1
      %p176 = por %p174, %p175
      %p178 = scmp.ne.s32.totalorder %s163, %s177
      %p179 = scmp.eq.s32.totalorder %s27, 0
      %p180 = por %p178, %p179
      %s181 = ssub.s32 %s21, %s28
      %p182 = scmp.eq.s32.totalorder %s181, 0
      %s184 = sadd.s32 %s183, 1
      %s185 = scalar_select %p182, %s183, %s184
      %p188 = pneg %p182
      %p189 = scmp.eq.s32.totalorder %s21, 1
      %p190 = por %p188, %p189
      %p191 = scmp.ne.s32.totalorder %s183, %s186
      %p192 = scmp.eq.s32.totalorder %s21, 0
      %p193 = por %p191, %p192
      %p194 = scmp.ne.s32.totalorder %s183, %s186
      %p195 = scmp.eq.s32.totalorder %s26, 1
      %p196 = por %p194, %p195
      %p197 = scmp.ne.s32.totalorder %s186, %s187
      %p198 = scmp.eq.s32.totalorder %s26, 0
      %p199 = por %p197, %p198
      %p200 = scmp.ne.s32.totalorder %s186, %s187
      %p201 = scmp.eq.s32.totalorder %s27, 1
      %p202 = por %p200, %p201
      %p204 = scmp.ne.s32.totalorder %s187, %s203
      %p205 = scmp.eq.s32.totalorder %s27, 0
      %p206 = por %p204, %p205
      %p207 = scmp.le.s32.totalorder 1, %s21
      %p208 = scmp.lt.s32.totalorder %s21, 3
      %p209 = pnand %p207, %p208
      %p210 = pneg %p209
      // Predicated region
      $region9: #{tpu_custom_call.1} parent=5 // pred_check
        _
      $region10: #{tpu_custom_call.1} parent=5 // pred_check_branch
        %212 = sbr.rel (%p209) target = $region12
      $region11: #{tpu_custom_call.1} parent=5 // pred_region
        %s213 = ssub.s32 %s21, 1
        // Predicated region
        $region13: #{tpu_custom_call.1} parent=11 // pred_check
          %p214 = pneg %p68
        $region14: #{tpu_custom_call.1} parent=11 // pred_check_branch
          %216 = sbr.rel (%p214) target = $region16
        $region15: #{tpu_custom_call.1} parent=11 // pred_region
          %s218 = ssub.s32 2048, 2048
          %219 = vsyncadd [#allocation6], %s218
          %s220 = sshll.u32 [#allocation5], 4
          %s221 = int_to_ptr.vmem [resolvable:$true] %s220
          %226 = dma.hbm_to_vmem [thread:$0]  %s1, 2048, %s221, [#allocation6], 128, 128, 8
        $region16: #{tpu_custom_call.1} parent=11 // pred_fallthru
          _
        // Predicated region
        $region17: #{tpu_custom_call.1} parent=11 // pred_check
          %p227 = pneg %p89
        $region18: #{tpu_custom_call.1} parent=11 // pred_check_branch
          %229 = sbr.rel (%p227) target = $region20
        $region19: #{tpu_custom_call.1} parent=11 // pred_region
          %s231 = ssub.s32 2048, 2048
          %232 = vsyncadd [#allocation6], %s231
          %s233 = sshll.u32 [#allocation7], 4
          %s234 = int_to_ptr.vmem [resolvable:$true] %s233
          %239 = dma.hbm_to_vmem [thread:$0]  %s2, 2048, %s234, [#allocation6], 128, 128, 8
        $region20: #{tpu_custom_call.1} parent=11 // pred_fallthru
          _
        // Predicated region
        $region21: #{tpu_custom_call.1} parent=11 // pred_check
          %p240 = pneg %p110
        $region22: #{tpu_custom_call.1} parent=11 // pred_check_branch
          %242 = sbr.rel (%p240) target = $region24
        $region23: #{tpu_custom_call.1} parent=11 // pred_region
          %s244 = ssub.s32 2048, 2048
          %245 = vsyncadd [#allocation9], %s244
          %s246 = sshll.u32 [#allocation8], 4
          %s247 = int_to_ptr.vmem [resolvable:$true] %s246
          %252 = dma.hbm_to_vmem [thread:$0]  %s3, 2048, %s247, [#allocation9], 128, 128, 8
        $region24: #{tpu_custom_call.1} parent=11 // pred_fallthru
          _
        // Predicated region
        $region25: #{tpu_custom_call.1} parent=11 // pred_check
          %p253 = pneg %p131
        $region26: #{tpu_custom_call.1} parent=11 // pred_check_branch
          %255 = sbr.rel (%p253) target = $region28
        $region27: #{tpu_custom_call.1} parent=11 // pred_region
          _
        $region28: #{tpu_custom_call.1} parent=11 // pred_fallthru
          _
        // Predicated region
        $region29: #{tpu_custom_call.1} parent=11 // pred_check
          %p256 = pneg %p152
        $region30: #{tpu_custom_call.1} parent=11 // pred_check_branch
          %258 = sbr.rel (%p256) target = $region32
        $region31: #{tpu_custom_call.1} parent=11 // pred_region
          _
        $region32: #{tpu_custom_call.1} parent=11 // pred_fallthru
          _
        // Predicated region
        $region33: #{tpu_custom_call.1} parent=11 // pred_check
          %p259 = pneg %p173
        $region34: #{tpu_custom_call.1} parent=11 // pred_check_branch
          %261 = sbr.rel (%p259) target = $region36
        $region35: #{tpu_custom_call.1} parent=11 // pred_region
          _
        $region36: #{tpu_custom_call.1} parent=11 // pred_fallthru
          _
      $region12: #{tpu_custom_call.1} parent=5 // pred_fallthru
        _
      %p262 = scmp.lt.s32.totalorder %s21, 2
      // Predicated region
      $region37: #{tpu_custom_call.1} parent=5 // pred_check
        %p263 = pneg %p262
      $region38: #{tpu_custom_call.1} parent=5 // pred_check_branch
        %265 = sbr.rel (%p263) target = $region40
      $region39: #{tpu_custom_call.1} parent=5 // pred_region
        // Predicated region
        $region41: #{tpu_custom_call.1} parent=39 // pred_check
          %p266 = pneg %p41
        $region42: #{tpu_custom_call.1} parent=39 // pred_check_branch
          %268 = sbr.rel (%p266) target = $region44
        $region43: #{tpu_custom_call.1} parent=39 // pred_region
          %s269 = sand.u32 %s31, 1
          %s270 = scalar_lea.sflag [#allocation3], %s269
          %s271 = sand.u32 %s31, 1
          %s272 = smul.addr %s271, 8
          %s273 = scalar_lea.vmem [#allocation2], %s272
          %s275 = ssub.s32 128, 128
          %276 = vsyncadd %s270, %s275
          %s277 = smul.addr %s21, 128
          %s278 = scalar_lea.hbm %s0, %s277
          %s280 = sshll.u32 %s273, 4
          %s281 = int_to_ptr.vmem [resolvable:$true] %s280
          %283 = dma.hbm_to_vmem [thread:$0]  %s278, 128, %s281, %s270
        $region44: #{tpu_custom_call.1} parent=39 // pred_fallthru
          _
      $region40: #{tpu_custom_call.1} parent=5 // pred_fallthru
        _
      %p284 = scmp.le.s32.totalorder 1, %s21
      %p285 = scmp.lt.s32.totalorder %s21, 3
      %p286 = pnand %p284, %p285
      %p287 = pneg %p286
      // Predicated region
      $region45: #{tpu_custom_call.1} parent=5 // pred_check
        _
      $region46: #{tpu_custom_call.1} parent=5 // pred_check_branch
        %289 = sbr.rel (%p286) target = $region48
      $region47: #{tpu_custom_call.1} parent=5 // pred_region
        %s290 = ssub.s32 %s21, 1
        %s291 = sand.u32 %s34, 1
        %s292 = scalar_lea.sflag [#allocation3], %s291
        %s293 = sand.u32 %s34, 1
        %s294 = smul.addr %s293, 8
        %s295 = scalar_lea.vmem [#allocation2], %s294
        // Predicated region
        $region49: #{tpu_custom_call.1} parent=47 // pred_check
          %p296 = pneg %p47
        $region50: #{tpu_custom_call.1} parent=47 // pred_check_branch
          %298 = sbr.rel (%p296) target = $region52
        $region51: #{tpu_custom_call.1} parent=47 // pred_region
          %299 = dma.done %s292, 128
        $region52: #{tpu_custom_call.1} parent=47 // pred_fallthru
          _
        // Predicated region
        $region53: #{tpu_custom_call.1} parent=47 // pred_check
          %p300 = pneg %p68
        $region54: #{tpu_custom_call.1} parent=47 // pred_check_branch
          %302 = sbr.rel (%p300) target = $region56
        $region55: #{tpu_custom_call.1} parent=47 // pred_region
          %303 = dma.done [#allocation6], 2048
        $region56: #{tpu_custom_call.1} parent=47 // pred_fallthru
          _
        // Predicated region
        $region57: #{tpu_custom_call.1} parent=47 // pred_check
          %p304 = pneg %p89
        $region58: #{tpu_custom_call.1} parent=47 // pred_check_branch
          %306 = sbr.rel (%p304) target = $region60
        $region59: #{tpu_custom_call.1} parent=47 // pred_region
          %307 = dma.done [#allocation6], 2048
        $region60: #{tpu_custom_call.1} parent=47 // pred_fallthru
          _
        // Predicated region
        $region61: #{tpu_custom_call.1} parent=47 // pred_check
          %p308 = pneg %p110
        $region62: #{tpu_custom_call.1} parent=47 // pred_check_branch
          %310 = sbr.rel (%p308) target = $region64
        $region63: #{tpu_custom_call.1} parent=47 // pred_region
          %311 = dma.done [#allocation9], 2048
        $region64: #{tpu_custom_call.1} parent=47 // pred_fallthru
          _
        %s312 = sand.u32 %s34, 1
        %s313 = scalar_lea.sflag [#allocation3], %s312
        %s314 = sand.u32 %s34, 1
        %s315 = smul.addr %s314, 8
        %s316 = scalar_lea.vmem [#allocation2], %s315
        %p317 = pneg %p47
        %p318 = pneg %p44
        %p319 = pneg %p68
        %p320 = pneg %p65
        %p321 = pneg %p89
        %p322 = pneg %p86
        %p323 = pneg %p110
        %p324 = pneg %p107
        %p325 = pneg %p131
        %p326 = pneg %p128
        %p327 = pneg %p152
        %p328 = pneg %p149
        %p329 = pneg %p173
        %p330 = pneg %p170
        %p331 = pneg %p199
        %p332 = pneg %p196
        %s333 = sand.u32 %s186, 1
        %s334 = scalar_lea.sflag [#allocation4], %s333
        %s335 = sand.u32 %s186, 1
        %s336 = smul.addr %s335, 8
        %s337 = scalar_lea.vmem [#allocation10], %s336
        %v338 = vld [vmem:[%s295] sm:$0xff]
        %v339 = vld [vmem:[#allocation5] sm:$0xff]
        %v340 = vld [vmem:[#allocation5 + $0x8] sm:$0xff]
        %v341 = vld [vmem:[#allocation5 + $0x10] sm:$0xff]
        %v342 = vld [vmem:[#allocation5 + $0x18] sm:$0xff]
        %v343 = vld [vmem:[#allocation5 + $0x20] sm:$0xff]
        %v344 = vld [vmem:[#allocation5 + $0x28] sm:$0xff]
        %v345 = vld [vmem:[#allocation5 + $0x30] sm:$0xff]
        %v346 = vld [vmem:[#allocation5 + $0x38] sm:$0xff]
        %v347 = vld [vmem:[#allocation5 + $0x40] sm:$0xff]
        %v348 = vld [vmem:[#allocation5 + $0x48] sm:$0xff]
        %v349 = vld [vmem:[#allocation5 + $0x50] sm:$0xff]
        %v350 = vld [vmem:[#allocation5 + $0x58] sm:$0xff]
        %v351 = vld [vmem:[#allocation5 + $0x60] sm:$0xff]
        %v352 = vld [vmem:[#allocation5 + $0x68] sm:$0xff]
        %v353 = vld [vmem:[#allocation5 + $0x70] sm:$0xff]
        %v354 = vld [vmem:[#allocation5 + $0x78] sm:$0xff]
        %v355 = vld [vmem:[%s4] sm:$0x1]
        %v357 = vlaneseq
        %v358 = vshrl.u32 %v357, 7
        %v359 = vsub.s32 0, %v358
        %v360 = vrot.slane %v355, %v359
        %362 = vmatprep.subr.mxu0 0.0
        %363 = vmatpush1.msra.mxu0 %v339
        %364 = vmatprep.subr.mxu0 0.0
        %365 = vmatpush1.msra.mxu0 %v340
        %366 = vmatprep.subr.mxu0 0.0
        %367 = vmatpush1.msra.mxu0 %v341
        %368 = vmatprep.subr.mxu0 0.0
        %369 = vmatpush1.msra.mxu0 %v342
        %370 = vmatprep.subr.mxu0 0.0
        %371 = vmatpush1.msra.mxu0 %v343
        %372 = vmatprep.subr.mxu0 0.0
        %373 = vmatpush1.msra.mxu0 %v344
        %374 = vmatprep.subr.mxu0 0.0
        %375 = vmatpush1.msra.mxu0 %v345
        %376 = vmatprep.subr.mxu0 0.0
        %377 = vmatpush1.msra.mxu0 %v346
        %378 = vmatprep.subr.mxu0 0.0
        %379 = vmatpush1.msra.mxu0 %v347
        %380 = vmatprep.subr.mxu0 0.0
        %381 = vmatpush1.msra.mxu0 %v348
        %382 = vmatprep.subr.mxu0 0.0
        %383 = vmatpush1.msra.mxu0 %v349
        %384 = vmatprep.subr.mxu0 0.0
        %385 = vmatpush1.msra.mxu0 %v350
        %386 = vmatprep.subr.mxu0 0.0
        %387 = vmatpush1.msra.mxu0 %v351
        %388 = vmatprep.subr.mxu0 0.0
        %389 = vmatpush1.msra.mxu0 %v352
        %390 = vmatprep.subr.mxu0 0.0
        %391 = vmatpush1.msra.mxu0 %v353
        %392 = vmatprep.subr.mxu0 0.0
        %393 = vmatpush1.msra.mxu0 %v354
        %394 = vmatprep.subr.mxu0 0.0
        %395 = vmatpush1.msra.mxu0 0.0
        %396 = vmatprep.subr.mxu0 0.0
        %397 = vmatpush1.msra.mxu0 0.0
        %398 = vmatprep.subr.mxu0 0.0
        %399 = vmatpush1.msra.mxu0 0.0
        %400 = vmatprep.subr.mxu0 0.0
        %401 = vmatpush1.msra.mxu0 0.0
        %402 = vmatprep.subr.mxu0 0.0
        %403 = vmatpush1.msra.mxu0 0.0
        %404 = vmatprep.subr.mxu0 0.0
        %405 = vmatpush1.msra.mxu0 0.0
        %406 = vmatprep.subr.mxu0 0.0
        %407 = vmatpush1.msra.mxu0 0.0
        %408 = vmatprep.subr.mxu0 0.0
        %409 = vmatpush1.msra.mxu0 0.0
        %410 = vmatprep.subr.mxu0 0.0
        %411 = vmatpush1.msra.mxu0 0.0
        %412 = vmatprep.subr.mxu0 0.0
        %413 = vmatpush1.msra.mxu0 0.0
        %414 = vmatprep.subr.mxu0 0.0
        %415 = vmatpush1.msra.mxu0 0.0
        %416 = vmatprep.subr.mxu0 0.0
        %417 = vmatpush1.msra.mxu0 0.0
        %418 = vmatprep.subr.mxu0 0.0
        %419 = vmatpush1.msra.mxu0 0.0
        %420 = vmatprep.subr.mxu0 0.0
        %421 = vmatpush1.msra.mxu0 0.0
        %422 = vmatprep.subr.mxu0 0.0
        %423 = vmatpush1.msra.mxu0 0.0
        %424 = vmatprep.subr.mxu0 0.0
        %425 = vmatpush1.msra.mxu0 0.0
        %426 = vmatprep.mubr.f32.mxu0 0.0
        %427 = vmatmul.mubr.f32.gmra.mrb[0].mxu0 %v338
        %v428 = vpop.f32.mrb[0].mxu0
        %v429 = vadd.f32 %v360, %v428
        %v430 = vpop.f32.mrb[0].mxu0
        %431 = vdwg.mxu0
        %v432 = vmul.f32 %v429, 0.25
        %v433 = vld [vmem:[#allocation7] sm:$0xff]
        %v434 = vld [vmem:[#allocation7 + $0x8] sm:$0xff]
        %v435 = vld [vmem:[#allocation7 + $0x10] sm:$0xff]
        %v436 = vld [vmem:[#allocation7 + $0x18] sm:$0xff]
        %v437 = vld [vmem:[#allocation7 + $0x20] sm:$0xff]
        %v438 = vld [vmem:[#allocation7 + $0x28] sm:$0xff]
        %v439 = vld [vmem:[#allocation7 + $0x30] sm:$0xff]
        %v440 = vld [vmem:[#allocation7 + $0x38] sm:$0xff]
        %v441 = vld [vmem:[#allocation7 + $0x40] sm:$0xff]
        %v442 = vld [vmem:[#allocation7 + $0x48] sm:$0xff]
        %v443 = vld [vmem:[#allocation7 + $0x50] sm:$0xff]
        %v444 = vld [vmem:[#allocation7 + $0x58] sm:$0xff]
        %v445 = vld [vmem:[#allocation7 + $0x60] sm:$0xff]
        %v446 = vld [vmem:[#allocation7 + $0x68] sm:$0xff]
        %v447 = vld [vmem:[#allocation7 + $0x70] sm:$0xff]
        %v448 = vld [vmem:[#allocation7 + $0x78] sm:$0xff]
        %v449 = vld [vmem:[%s5] sm:$0x1]
        %v451 = vlaneseq
        %v452 = vshrl.u32 %v451, 7
        %v453 = vsub.s32 0, %v452
        %v454 = vrot.slane %v449, %v453
        %456 = vmatprep.subr.mxu0 0.0
        %457 = vmatpush1.msra.mxu0 %v433
        %458 = vmatprep.subr.mxu0 0.0
        %459 = vmatpush1.msra.mxu0 %v434
        %460 = vmatprep.subr.mxu0 0.0
        %461 = vmatpush1.msra.mxu0 %v435
        %462 = vmatprep.subr.mxu0 0.0
        %463 = vmatpush1.msra.mxu0 %v436
        %464 = vmatprep.subr.mxu0 0.0
        %465 = vmatpush1.msra.mxu0 %v437
        %466 = vmatprep.subr.mxu0 0.0
        %467 = vmatpush1.msra.mxu0 %v438
        %468 = vmatprep.subr.mxu0 0.0
        %469 = vmatpush1.msra.mxu0 %v439
        %470 = vmatprep.subr.mxu0 0.0
        %471 = vmatpush1.msra.mxu0 %v440
        %472 = vmatprep.subr.mxu0 0.0
        %473 = vmatpush1.msra.mxu0 %v441
        %474 = vmatprep.subr.mxu0 0.0
        %475 = vmatpush1.msra.mxu0 %v442
        %476 = vmatprep.subr.mxu0 0.0
        %477 = vmatpush1.msra.mxu0 %v443
        %478 = vmatprep.subr.mxu0 0.0
        %479 = vmatpush1.msra.mxu0 %v444
        %480 = vmatprep.subr.mxu0 0.0
        %481 = vmatpush1.msra.mxu0 %v445
        %482 = vmatprep.subr.mxu0 0.0
        %483 = vmatpush1.msra.mxu0 %v446
        %484 = vmatprep.subr.mxu0 0.0
        %485 = vmatpush1.msra.mxu0 %v447
        %486 = vmatprep.subr.mxu0 0.0
        %487 = vmatpush1.msra.mxu0 %v448
        %488 = vmatprep.subr.mxu0 0.0
        %489 = vmatpush1.msra.mxu0 0.0
        %490 = vmatprep.subr.mxu0 0.0
        %491 = vmatpush1.msra.mxu0 0.0
        %492 = vmatprep.subr.mxu0 0.0
        %493 = vmatpush1.msra.mxu0 0.0
        %494 = vmatprep.subr.mxu0 0.0
        %495 = vmatpush1.msra.mxu0 0.0
        %496 = vmatprep.subr.mxu0 0.0
        %497 = vmatpush1.msra.mxu0 0.0
        %498 = vmatprep.subr.mxu0 0.0
        %499 = vmatpush1.msra.mxu0 0.0
        %500 = vmatprep.subr.mxu0 0.0
        %501 = vmatpush1.msra.mxu0 0.0
        %502 = vmatprep.subr.mxu0 0.0
        %503 = vmatpush1.msra.mxu0 0.0
        %504 = vmatprep.subr.mxu0 0.0
        %505 = vmatpush1.msra.mxu0 0.0
        %506 = vmatprep.subr.mxu0 0.0
        %507 = vmatpush1.msra.mxu0 0.0
        %508 = vmatprep.subr.mxu0 0.0
        %509 = vmatpush1.msra.mxu0 0.0
        %510 = vmatprep.subr.mxu0 0.0
        %511 = vmatpush1.msra.mxu0 0.0
        %512 = vmatprep.subr.mxu0 0.0
        %513 = vmatpush1.msra.mxu0 0.0
        %514 = vmatprep.subr.mxu0 0.0
        %515 = vmatpush1.msra.mxu0 0.0
        %516 = vmatprep.subr.mxu0 0.0
        %517 = vmatpush1.msra.mxu0 0.0
        %518 = vmatprep.subr.mxu0 0.0
        %519 = vmatpush1.msra.mxu0 0.0
        %520 = vmatprep.mubr.f32.mxu0 0.0
        %521 = vmatmul.mubr.f32.gmra.mrb[0].mxu0 %v338
        %v522 = vpop.f32.mrb[0].mxu0
        %v523 = vadd.f32 %v454, %v522
        %v524 = vpop.f32.mrb[0].mxu0
        %525 = vdwg.mxu0
        %v526 = vld [vmem:[#allocation8] sm:$0xff]
        %v527 = vld [vmem:[#allocation8 + $0x8] sm:$0xff]
        %v528 = vld [vmem:[#allocation8 + $0x10] sm:$0xff]
        %v529 = vld [vmem:[#allocation8 + $0x18] sm:$0xff]
        %v530 = vld [vmem:[#allocation8 + $0x20] sm:$0xff]
        %v531 = vld [vmem:[#allocation8 + $0x28] sm:$0xff]
        %v532 = vld [vmem:[#allocation8 + $0x30] sm:$0xff]
        %v533 = vld [vmem:[#allocation8 + $0x38] sm:$0xff]
        %v534 = vld [vmem:[#allocation8 + $0x40] sm:$0xff]
        %v535 = vld [vmem:[#allocation8 + $0x48] sm:$0xff]
        %v536 = vld [vmem:[#allocation8 + $0x50] sm:$0xff]
        %v537 = vld [vmem:[#allocation8 + $0x58] sm:$0xff]
        %v538 = vld [vmem:[#allocation8 + $0x60] sm:$0xff]
        %v539 = vld [vmem:[#allocation8 + $0x68] sm:$0xff]
        %v540 = vld [vmem:[#allocation8 + $0x70] sm:$0xff]
        %v541 = vld [vmem:[#allocation8 + $0x78] sm:$0xff]
        %v542 = vld [vmem:[%s6] sm:$0x1]
        %v544 = vlaneseq
        %v545 = vshrl.u32 %v544, 7
        %v546 = vsub.s32 0, %v545
        %v547 = vrot.slane %v542, %v546
        %549 = vmatprep.subr.mxu0 0.0
        %550 = vmatpush1.msra.mxu0 %v526
        %551 = vmatprep.subr.mxu0 0.0
        %552 = vmatpush1.msra.mxu0 %v527
        %553 = vmatprep.subr.mxu0 0.0
        %554 = vmatpush1.msra.mxu0 %v528
        %555 = vmatprep.subr.mxu0 0.0
        %556 = vmatpush1.msra.mxu0 %v529
        %557 = vmatprep.subr.mxu0 0.0
        %558 = vmatpush1.msra.mxu0 %v530
        %559 = vmatprep.subr.mxu0 0.0
        %560 = vmatpush1.msra.mxu0 %v531
        %561 = vmatprep.subr.mxu0 0.0
        %562 = vmatpush1.msra.mxu0 %v532
        %563 = vmatprep.subr.mxu0 0.0
        %564 = vmatpush1.msra.mxu0 %v533
        %565 = vmatprep.subr.mxu0 0.0
        %566 = vmatpush1.msra.mxu0 %v534
        %567 = vmatprep.subr.mxu0 0.0
        %568 = vmatpush1.msra.mxu0 %v535
        %569 = vmatprep.subr.mxu0 0.0
        %570 = vmatpush1.msra.mxu0 %v536
        %571 = vmatprep.subr.mxu0 0.0
        %572 = vmatpush1.msra.mxu0 %v537
        %573 = vmatprep.subr.mxu0 0.0
        %574 = vmatpush1.msra.mxu0 %v538
        %575 = vmatprep.subr.mxu0 0.0
        %576 = vmatpush1.msra.mxu0 %v539
        %577 = vmatprep.subr.mxu0 0.0
        %578 = vmatpush1.msra.mxu0 %v540
        %579 = vmatprep.subr.mxu0 0.0
        %580 = vmatpush1.msra.mxu0 %v541
        %581 = vmatprep.subr.mxu0 0.0
        %582 = vmatpush1.msra.mxu0 0.0
        %583 = vmatprep.subr.mxu0 0.0
        %584 = vmatpush1.msra.mxu0 0.0
        %585 = vmatprep.subr.mxu0 0.0
        %586 = vmatpush1.msra.mxu0 0.0
        %587 = vmatprep.subr.mxu0 0.0
        %588 = vmatpush1.msra.mxu0 0.0
        %589 = vmatprep.subr.mxu0 0.0
        %590 = vmatpush1.msra.mxu0 0.0
        %591 = vmatprep.subr.mxu0 0.0
        %592 = vmatpush1.msra.mxu0 0.0
        %593 = vmatprep.subr.mxu0 0.0
        %594 = vmatpush1.msra.mxu0 0.0
        %595 = vmatprep.subr.mxu0 0.0
        %596 = vmatpush1.msra.mxu0 0.0
        %597 = vmatprep.subr.mxu0 0.0
        %598 = vmatpush1.msra.mxu0 0.0
        %599 = vmatprep.subr.mxu0 0.0
        %600 = vmatpush1.msra.mxu0 0.0
        %601 = vmatprep.subr.mxu0 0.0
        %602 = vmatpush1.msra.mxu0 0.0
        %603 = vmatprep.subr.mxu0 0.0
        %604 = vmatpush1.msra.mxu0 0.0
        %605 = vmatprep.subr.mxu0 0.0
        %606 = vmatpush1.msra.mxu0 0.0
        %607 = vmatprep.subr.mxu0 0.0
        %608 = vmatpush1.msra.mxu0 0.0
        %609 = vmatprep.subr.mxu0 0.0
        %610 = vmatpush1.msra.mxu0 0.0
        %611 = vmatprep.subr.mxu0 0.0
        %612 = vmatpush1.msra.mxu0 0.0
        %613 = vmatprep.mubr.f32.mxu0 0.0
        %614 = vmatmul.mubr.f32.gmra.mrb[0].mxu0 %v338
        %v615 = vpop.f32.mrb[0].mxu0
        %v616 = vadd.f32 %v547, %v615
        %v617 = vpop.f32.mrb[0].mxu0
        %618 = vdwg.mxu0
        %619 = vmatprep.subr.mxu0 0.0
        %620 = vmatpush1.xpose.msra.mxu0 %v523
        %621 = vmatprep.subr.mxu0 0.0
        %622 = vmatpush1.xpose.msra.mxu0 0.0
        %623 = vmatprep.subr.mxu0 0.0
        %624 = vmatpush1.xpose.msra.mxu0 0.0
        %625 = vmatprep.subr.mxu0 0.0
        %626 = vmatpush1.xpose.msra.mxu0 0.0
        %627 = vmatprep.subr.mxu0 0.0
        %628 = vmatpush1.xpose.msra.mxu0 0.0
        %629 = vmatprep.subr.mxu0 0.0
        %630 = vmatpush1.xpose.msra.mxu0 0.0
        %631 = vmatprep.subr.mxu0 0.0
        %632 = vmatpush1.xpose.msra.mxu0 0.0
        %633 = vmatprep.subr.mxu0 0.0
        %634 = vmatpush1.xpose.msra.mxu0 0.0
        %635 = vmatprep.subr.mxu0 0.0
        %636 = vmatpush1.xpose.msra.mxu0 0.0
        %637 = vmatprep.subr.mxu0 0.0
        %638 = vmatpush1.xpose.msra.mxu0 0.0
        %639 = vmatprep.subr.mxu0 0.0
        %640 = vmatpush1.xpose.msra.mxu0 0.0
        %641 = vmatprep.subr.mxu0 0.0
        %642 = vmatpush1.xpose.msra.mxu0 0.0
        %643 = vmatprep.subr.mxu0 0.0
        %644 = vmatpush1.xpose.msra.mxu0 0.0
        %645 = vmatprep.subr.mxu0 0.0
        %646 = vmatpush1.xpose.msra.mxu0 0.0
        %647 = vmatprep.subr.mxu0 0.0
        %648 = vmatpush1.xpose.msra.mxu0 0.0
        %649 = vmatprep.subr.mxu0 0.0
        %650 = vmatpush1.xpose.msra.mxu0 0.0
        %651 = vmatprep.subr.mxu0 0.0
        %652 = vmatpush1.xpose.msra.mxu0 0.0
        %653 = vmatprep.subr.mxu0 0.0
        %654 = vmatpush1.xpose.msra.mxu0 0.0
        %655 = vmatprep.subr.mxu0 0.0
        %656 = vmatpush1.xpose.msra.mxu0 0.0
        %657 = vmatprep.subr.mxu0 0.0
        %658 = vmatpush1.xpose.msra.mxu0 0.0
        %659 = vmatprep.subr.mxu0 0.0
        %660 = vmatpush1.xpose.msra.mxu0 0.0
        %661 = vmatprep.subr.mxu0 0.0
        %662 = vmatpush1.xpose.msra.mxu0 0.0
        %663 = vmatprep.subr.mxu0 0.0
        %664 = vmatpush1.xpose.msra.mxu0 0.0
        %665 = vmatprep.subr.mxu0 0.0
        %666 = vmatpush1.xpose.msra.mxu0 0.0
        %667 = vmatprep.subr.mxu0 0.0
        %668 = vmatpush1.xpose.msra.mxu0 0.0
        %669 = vmatprep.subr.mxu0 0.0
        %670 = vmatpush1.xpose.msra.mxu0 0.0
        %671 = vmatprep.subr.mxu0 0.0
        %672 = vmatpush1.xpose.msra.mxu0 0.0
        %673 = vmatprep.subr.mxu0 0.0
        %674 = vmatpush1.xpose.msra.mxu0 0.0
        %675 = vmatprep.subr.mxu0 0.0
        %676 = vmatpush1.xpose.msra.mxu0 0.0
        %677 = vmatprep.subr.mxu0 0.0
        %678 = vmatpush1.xpose.msra.mxu0 0.0
        %679 = vmatprep.subr.mxu0 0.0
        %680 = vmatpush1.xpose.msra.mxu0 0.0
        %681 = vmatprep.subr.mxu0 0.0
        %682 = vmatpush1.xpose.msra.mxu0 0.0
        %683 = vmatprep.mubr.f32.mxu0 0.0
        %684 = vmatmul.mubr.f32.gmra.mrb[0].mxu0 %v432
        %v685 = vpop.f32.mrb[0].mxu0
        %v686 = vadd.f32 0.0, %v685
        %v687 = vpop.f32.mrb[0].mxu0
        %688 = vdwg.mxu0
        %vm689 = vcmask 64512
        %v690 = vsel %vm689, %v686, -inf
        %691 = vmax.xlane.f32.xlu0 %v690
        %v692 = vpop.xlane.xlu0 %691
        %v693 = vsub.f32 %v686, %v692
        %v694 = vmul.f32 %v693, 1.442695
        %v695 = vpow.pop %v694
        %v696 = vsel %vm689, %v695, 0.0
        %697 = vadd.xlane.f32.xlu0 %v696
        %v698 = vpop.xlane.xlu0 %697
        %v699 = vrcp.pop %v698
        %v700 = vmul.f32 %v695, %v699
        %v702 = vsel %vm689, %v700, 0
        %704 = vmatprep.subr.mxu0 0.0
        %705 = vmatpush1.msra.mxu0 %v616
        %706 = vmatprep.subr.mxu0 0.0
        %707 = vmatpush1.msra.mxu0 0.0
        %708 = vmatprep.subr.mxu0 0.0
        %709 = vmatpush1.msra.mxu0 0.0
        %710 = vmatprep.subr.mxu0 0.0
        %711 = vmatpush1.msra.mxu0 0.0
        %712 = vmatprep.subr.mxu0 0.0
        %713 = vmatpush1.msra.mxu0 0.0
        %714 = vmatprep.subr.mxu0 0.0
        %715 = vmatpush1.msra.mxu0 0.0
        %716 = vmatprep.subr.mxu0 0.0
        %717 = vmatpush1.msra.mxu0 0.0
        %718 = vmatprep.subr.mxu0 0.0
        %719 = vmatpush1.msra.mxu0 0.0
        %720 = vmatprep.subr.mxu0 0.0
        %721 = vmatpush1.msra.mxu0 0.0
        %722 = vmatprep.subr.mxu0 0.0
        %723 = vmatpush1.msra.mxu0 0.0
        %724 = vmatprep.subr.mxu0 0.0
        %725 = vmatpush1.msra.mxu0 0.0
        %726 = vmatprep.subr.mxu0 0.0
        %727 = vmatpush1.msra.mxu0 0.0
        %728 = vmatprep.subr.mxu0 0.0
        %729 = vmatpush1.msra.mxu0 0.0
        %730 = vmatprep.subr.mxu0 0.0
        %731 = vmatpush1.msra.mxu0 0.0
        %732 = vmatprep.subr.mxu0 0.0
        %733 = vmatpush1.msra.mxu0 0.0
        %734 = vmatprep.subr.mxu0 0.0
        %735 = vmatpush1.msra.mxu0 0.0
        %736 = vmatprep.subr.mxu0 0.0
        %737 = vmatpush1.msra.mxu0 0.0
        %738 = vmatprep.subr.mxu0 0.0
        %739 = vmatpush1.msra.mxu0 0.0
        %740 = vmatprep.subr.mxu0 0.0
        %741 = vmatpush1.msra.mxu0 0.0
        %742 = vmatprep.subr.mxu0 0.0
        %743 = vmatpush1.msra.mxu0 0.0
        %744 = vmatprep.subr.mxu0 0.0
        %745 = vmatpush1.msra.mxu0 0.0
        %746 = vmatprep.subr.mxu0 0.0
        %747 = vmatpush1.msra.mxu0 0.0
        %748 = vmatprep.subr.mxu0 0.0
        %749 = vmatpush1.msra.mxu0 0.0
        %750 = vmatprep.subr.mxu0 0.0
        %751 = vmatpush1.msra.mxu0 0.0
        %752 = vmatprep.subr.mxu0 0.0
        %753 = vmatpush1.msra.mxu0 0.0
        %754 = vmatprep.subr.mxu0 0.0
        %755 = vmatpush1.msra.mxu0 0.0
        %756 = vmatprep.subr.mxu0 0.0
        %757 = vmatpush1.msra.mxu0 0.0
        %758 = vmatprep.subr.mxu0 0.0
        %759 = vmatpush1.msra.mxu0 0.0
        %760 = vmatprep.subr.mxu0 0.0
        %761 = vmatpush1.msra.mxu0 0.0
        %762 = vmatprep.subr.mxu0 0.0
        %763 = vmatpush1.msra.mxu0 0.0
        %764 = vmatprep.subr.mxu0 0.0
        %765 = vmatpush1.msra.mxu0 0.0
        %766 = vmatprep.subr.mxu0 0.0
        %767 = vmatpush1.msra.mxu0 0.0
        %768 = vmatprep.mubr.f32.mxu0 0.0
        %769 = vmatmul.mubr.f32.gmra.mrb[0].mxu0 %v702
        %v770 = vpop.f32.mrb[0].mxu0
        %v771 = vadd.f32 0.0, %v770
        %v772 = vpop.f32.mrb[0].mxu0
        %773 = vdwg.mxu0
        %774 = vst [vmem:[%s337] sm:$0xff] %v771
        %s775 = sand.u32 %s186, 1
        %s776 = scalar_lea.sflag [#allocation4], %s775
        %s777 = sand.u32 %s186, 1
        %s778 = smul.addr %s777, 8
        %s779 = scalar_lea.vmem [#allocation10], %s778
        // Predicated region
        $region65: #{tpu_custom_call.1} parent=47 // pred_check
          %p780 = pneg %p196
        $region66: #{tpu_custom_call.1} parent=47 // pred_check_branch
          %782 = sbr.rel (%p780) target = $region68
        $region67: #{tpu_custom_call.1} parent=47 // pred_region
          %s784 = ssub.s32 128, 128
          %785 = vsyncadd %s776, %s784
          %s786 = smul.addr %s26, 128
          %s787 = scalar_lea.hbm %s7, %s786
          %s789 = sshll.u32 %s779, 4
          %s790 = int_to_ptr.vmem [resolvable:$true] %s789
          %792 = dma.vmem_to_hbm [thread:$0]  %s790, 128, %s787, %s776
        $region68: #{tpu_custom_call.1} parent=47 // pred_fallthru
          _
      $region48: #{tpu_custom_call.1} parent=5 // pred_fallthru
        _
      %p793 = scmp.le.s32.totalorder 2, %s21
      // Predicated region
      $region69: #{tpu_custom_call.1} parent=5 // pred_check
        %p794 = pneg %p793
      $region70: #{tpu_custom_call.1} parent=5 // pred_check_branch
        %796 = sbr.rel (%p794) target = $region72
      $region71: #{tpu_custom_call.1} parent=5 // pred_region
        %s797 = ssub.s32 %s21, 2
        // Predicated region
        $region73: #{tpu_custom_call.1} parent=71 // pred_check
          %p798 = pneg %p202
        $region74: #{tpu_custom_call.1} parent=71 // pred_check_branch
          %800 = sbr.rel (%p798) target = $region76
        $region75: #{tpu_custom_call.1} parent=71 // pred_region
          %s801 = sand.u32 %s187, 1
          %s802 = scalar_lea.sflag [#allocation4], %s801
          %s803 = sand.u32 %s187, 1
          %s804 = smul.addr %s803, 8
          %s805 = scalar_lea.vmem [#allocation10], %s804
          %806 = dma.done %s802, 128
        $region76: #{tpu_custom_call.1} parent=71 // pred_fallthru
          _
      $region72: #{tpu_custom_call.1} parent=5 // pred_fallthru
        _
    $region6: #{tpu_custom_call.1} parent=1 // loop_footer
      %s25 = sadd.s32 1, %s21
    $region7: #{tpu_custom_call.1} parent=1 // loop_footer_branch
      %20 = sbr.rel target = $region3
    $region8: #{tpu_custom_call.1} parent=1 // loop_exit
      _
    %807 = vsyncpa [#allocation3], 1
    %s808 = scalar_lea.sflag [#allocation3], 1
    %809 = vsyncpa %s808, 1
    %810 = vsyncpa [#allocation6], 1
    %811 = vsyncpa [#allocation9], 1
    %812 = vsyncpa [#allocation4], 1
    %s813 = scalar_lea.sflag [#allocation4], 1
    %814 = vsyncpa %s813, 1

</llo_original>
